<compile_context>
chip_gen: v7x
topology: tpu7x:2x2x1
jax: 0.10.0
libtpu: 0.0.40
codegen_flags: <defaults>
</compile_context>

<pallas_src>
import jax
import jax.numpy as jnp
from jax.experimental import pallas as pl
from jax.experimental.pallas import tpu as pltpu


def _round_up(a: int, b: int) -> int:
    return ((a + b - 1) // b) * b


def mlp_kernel(x_ref, w1_ref, b1_ref, w2t_ref, b2_ref, w3_ref, b3_ref, o_ref):
    """One batch tile of the 3-layer MLP with transposed (W, TM) activations.

    x_ref:   (1, TM)  input, batch along lanes (lane-dense)
    w1_ref:  (W, 1)   Linear(1, W) weight as a column
    b1_ref:  (W, 1)
    w2t_ref: (W, W)   Linear(W, W) weight, pre-transposed so h2_t = w2^T @ h1_t
    b2_ref:  (W, 1)
    w3_ref:  (W, 1)   Linear(W, 1) weight as a column
    b3_ref:  (1, 1)   scalar bias in SMEM
    o_ref:   (1, TM)  lane-dense output
    """
    x = x_ref[...]                                              # (1, TM)

    # Layer 1: Linear(1, W) is a rank-1 outer product -> VPU broadcast FMA.
    h1 = jnp.maximum(w1_ref[...] * x + b1_ref[...], 0.0)        # (W, TM)

    # Layer 2: Linear(W, W) on the MXU; output stays lane-dense along TM.
    h2 = jnp.dot(w2t_ref[...], h1, preferred_element_type=jnp.float32)
    h2 = jnp.maximum(h2 + b2_ref[...], 0.0)                     # (W, TM)

    # Layer 3: Linear(W, 1) is a length-W contraction -> VPU mul + sublane sum.
    y = jnp.sum(h2 * w3_ref[...], axis=0, keepdims=True)        # (1, TM)
    o_ref[...] = (y + b3_ref[0, 0]).astype(o_ref.dtype)


def net_forward(x, params, *, tm=8192):
    """x: (N, 1) float32. params: dict of weights/biases. Returns (N, 1)."""
    w1, b1, w2, b2, w3, b3 = (
        params["w1"], params["b1"], params["w2"],
        params["b2"], params["w3"], params["b3"],
    )
    N = x.shape[0]
    W = w1.shape[1]

    # Lane-dense batch tiling: batch lives on the lane axis (multiple of 128).
    n128 = _round_up(N, 128)
    tm = max(128, min(tm, n128))
    # Keep >= 2 grid steps when the batch allows (v7x has 2 TensorCores).
    if n128 >= 256 and n128 // tm < 2:
        tm = _round_up(max(n128 // 2, 128), 128)
    n_pad = _round_up(n128, tm)
    grid = (n_pad // tm,)

    # Transposed, zero-padded, lane-dense input row (1, n_pad).
    x_row = jnp.zeros((1, n_pad), jnp.float32).at[0, :N].set(x[:, 0])

    # One-time weight layout prep (tiny arrays, done outside the kernel).
    w1_c = jnp.reshape(w1, (W, 1))      # (1, W) -> (W, 1)
    b1_c = jnp.reshape(b1, (W, 1))
    w2_t = jnp.transpose(w2)            # (W, W): h2_t = w2^T @ h1_t
    b2_c = jnp.reshape(b2, (W, 1))
    w3_c = jnp.reshape(w3, (W, 1))
    b3_s = jnp.reshape(b3, (1, 1))

    out_row = pl.pallas_call(
        mlp_kernel,
        out_shape=jax.ShapeDtypeStruct((1, n_pad), jnp.float32),
        grid_spec=pltpu.PrefetchScalarGridSpec(
            num_scalar_prefetch=0,
            grid=grid,
            in_specs=[
                pl.BlockSpec((1, tm), lambda i: (0, i)),     # x (lane-dense tile)
                pl.BlockSpec((W, 1), lambda i: (0, 0)),      # w1 column
                pl.BlockSpec((W, 1), lambda i: (0, 0)),      # b1 column
                pl.BlockSpec((W, W), lambda i: (0, 0)),      # w2^T
                pl.BlockSpec((W, 1), lambda i: (0, 0)),      # b2 column
                pl.BlockSpec((W, 1), lambda i: (0, 0)),      # w3 column
                pl.BlockSpec(memory_space=pltpu.MemorySpace.SMEM),  # b3 scalar
            ],
            out_specs=pl.BlockSpec((1, tm), lambda i: (0, i)),
        ),
        compiler_params=pltpu.CompilerParams(
            dimension_semantics=("parallel",),
        ),
    )(x_row, w1_c, b1_c, w2_t, b2_c, w3_c, b3_s)

    return out_row[0, :N][:, None]


def init_params(key, width):
    """Deterministic init mimicking PyTorch Linear (uniform(-1/sqrt(fan_in), +))."""
    ks = jax.random.split(key, 6)

    def lin(kw, kb, fan_in, fan_out):
        bound = 1.0 / jnp.sqrt(jnp.float32(fan_in))
        w = jax.random.uniform(kw, (fan_in, fan_out), jnp.float32, -bound, bound)
        b = jax.random.uniform(kb, (1, fan_out), jnp.float32, -bound, bound)
        return w, b

    w1, b1 = lin(ks[0], ks[1], 1, width)
    w2, b2 = lin(ks[2], ks[3], width, width)
    w3, b3 = lin(ks[4], ks[5], width, 1)
    return {"w1": w1, "b1": b1, "w2": w2, "b2": b2, "w3": w3, "b3": b3}


def net_forward_ref(x, p):
    h1 = jnp.maximum(x @ p["w1"] + p["b1"], 0.0)
    h2 = jnp.maximum(h1 @ p["w2"] + p["b2"], 0.0)
    return h2 @ p["w3"] + p["b3"]


if __name__ == "__main__":
    key = jax.random.PRNGKey(0)
    k_params, k_x = jax.random.split(key)

    width = 32
    batch = 1000  # exercises the pad-to-128 path and a 2-step grid

    params = init_params(k_params, width)
    x = jax.random.normal(k_x, (batch, 1), jnp.float32)

    out = net_forward(x, params)
    out = jax.block_until_ready(out)

    ref = net_forward_ref(x, params)
    assert out.shape == (batch, 1)
    assert jnp.allclose(out, ref, atol=1e-5, rtol=1e-4), "mismatch vs reference"

    print("KERNEL_OK")
</pallas_src>

<mosaic_0001>
module attributes {stable_mosaic.version = 11 : i64} {
  func.func @mlp_kernel(%arg0: i32, %arg1: memref<1x512xf32, #tpu.memory_space<vmem>>, %arg2: memref<32x1xf32, #tpu.memory_space<vmem>>, %arg3: memref<32x1xf32, #tpu.memory_space<vmem>>, %arg4: memref<32x32xf32, #tpu.memory_space<vmem>>, %arg5: memref<32x1xf32, #tpu.memory_space<vmem>>, %arg6: memref<32x1xf32, #tpu.memory_space<vmem>>, %arg7: memref<1x1xf32, #tpu.memory_space<smem>>, %arg8: memref<1x512xf32, #tpu.memory_space<vmem>>) attributes {dimension_semantics = [#tpu.dimension_semantics<parallel>], iteration_bounds = array<i64: 2>, scalar_prefetch = 0 : i64, scratch_operands = 0 : i64, tpu.core_type = #tpu.core_type<tc>, window_params = [{transform_indices = @transform_0, window_bounds = array<i64: 1, 512>}, {pipeline_mode = #tpu.pipeline_mode<synchronous>, transform_indices = @transform_1, window_bounds = array<i64: 32, 1>}, {pipeline_mode = #tpu.pipeline_mode<synchronous>, transform_indices = @transform_2, window_bounds = array<i64: 32, 1>}, {pipeline_mode = #tpu.pipeline_mode<synchronous>, transform_indices = @transform_3, window_bounds = array<i64: 32, 32>}, {pipeline_mode = #tpu.pipeline_mode<synchronous>, transform_indices = @transform_4, window_bounds = array<i64: 32, 1>}, {pipeline_mode = #tpu.pipeline_mode<synchronous>, transform_indices = @transform_5, window_bounds = array<i64: 32, 1>}, {transform_indices = @transform_6, window_bounds = array<i64: 1, 1>}, {transform_indices = @transform_7, window_bounds = array<i64: 1, 512>}]} {
    %c0 = arith.constant 0 : index
    %c0_0 = arith.constant 0 : index
    %0 = vector.load %arg1[%c0, %c0_0] : memref<1x512xf32, #tpu.memory_space<vmem>>, vector<1x512xf32>
    %c0_1 = arith.constant 0 : index
    %c0_2 = arith.constant 0 : index
    %1 = vector.load %arg2[%c0_1, %c0_2] : memref<32x1xf32, #tpu.memory_space<vmem>>, vector<32x1xf32>
    %2 = vector.broadcast %1 : vector<32x1xf32> to vector<32x512xf32>
    %3 = vector.broadcast %0 : vector<1x512xf32> to vector<32x512xf32>
    %4 = arith.mulf %2, %3 : vector<32x512xf32>
    %c0_3 = arith.constant 0 : index
    %c0_4 = arith.constant 0 : index
    %5 = vector.load %arg3[%c0_3, %c0_4] : memref<32x1xf32, #tpu.memory_space<vmem>>, vector<32x1xf32>
    %6 = vector.broadcast %5 : vector<32x1xf32> to vector<32x512xf32>
    %7 = arith.addf %4, %6 : vector<32x512xf32>
    %cst = arith.constant 0.000000e+00 : f32
    %8 = vector.broadcast %cst : f32 to vector<32x512xf32>
    %9 = arith.maximumf %7, %8 : vector<32x512xf32>
    %c0_5 = arith.constant 0 : index
    %c0_6 = arith.constant 0 : index
    %10 = vector.load %arg4[%c0_5, %c0_6] : memref<32x32xf32, #tpu.memory_space<vmem>>, vector<32x32xf32>
    %cst_7 = arith.constant dense<0.000000e+00> : vector<32x512xf32>
    %11 = tpu.matmul %10, %9, %cst_7 {dimension_numbers = #tpu.dot_dimension_numbers<[1], [0], [0], [1], [0, 0, 1, 1], [], []>} : vector<32x32xf32>, vector<32x512xf32>, vector<32x512xf32> -> vector<32x512xf32>
    %c0_8 = arith.constant 0 : index
    %c0_9 = arith.constant 0 : index
    %12 = vector.load %arg5[%c0_8, %c0_9] : memref<32x1xf32, #tpu.memory_space<vmem>>, vector<32x1xf32>
    %13 = vector.broadcast %12 : vector<32x1xf32> to vector<32x512xf32>
    %14 = arith.addf %11, %13 : vector<32x512xf32>
    %cst_10 = arith.constant 0.000000e+00 : f32
    %15 = vector.broadcast %cst_10 : f32 to vector<32x512xf32>
    %16 = arith.maximumf %14, %15 : vector<32x512xf32>
    %c0_11 = arith.constant 0 : index
    %c0_12 = arith.constant 0 : index
    %17 = vector.load %arg6[%c0_11, %c0_12] : memref<32x1xf32, #tpu.memory_space<vmem>>, vector<32x1xf32>
    %18 = vector.broadcast %17 : vector<32x1xf32> to vector<32x512xf32>
    %19 = arith.mulf %16, %18 : vector<32x512xf32>
    %cst_13 = arith.constant dense<0.000000e+00> : vector<512xf32>
    %20 = vector.multi_reduction <add>, %19, %cst_13 [0] : vector<32x512xf32> to vector<512xf32>
    %21 = vector.shape_cast %20 : vector<512xf32> to vector<1x512xf32>
    %c0_14 = arith.constant 0 : index
    %c0_15 = arith.constant 0 : index
    %22 = memref.load %arg7[%c0_14, %c0_15] : memref<1x1xf32, #tpu.memory_space<smem>>
    %23 = vector.broadcast %22 : f32 to vector<1x512xf32>
    %24 = arith.addf %21, %23 : vector<1x512xf32>
    %c0_16 = arith.constant 0 : index
    %c0_17 = arith.constant 0 : index
    %25 = vector.load %arg8[%c0_16, %c0_17] : memref<1x512xf32, #tpu.memory_space<vmem>>, vector<1x512xf32>
    tpu.vector_store %arg8[%c0_16, %c0_17], %24 {strides = array<i32>} : memref<1x512xf32, #tpu.memory_space<vmem>>, vector<1x512xf32>,
    return
  }
  func.func @transform_0(%arg0: i32) -> (i32, i32) {
    %c0_i32 = arith.constant 0 : i32
    %c0_i32_0 = arith.constant 0 : i32
    return %c0_i32, %arg0 : i32, i32
  }
  func.func @transform_1(%arg0: i32) -> (i32, i32) {
    %c0_i32 = arith.constant 0 : i32
    %c0_i32_0 = arith.constant 0 : i32
    %c0_i32_1 = arith.constant 0 : i32
    return %c0_i32, %c0_i32_0 : i32, i32
  }
  func.func @transform_2(%arg0: i32) -> (i32, i32) {
    %c0_i32 = arith.constant 0 : i32
    %c0_i32_0 = arith.constant 0 : i32
    %c0_i32_1 = arith.constant 0 : i32
    return %c0_i32, %c0_i32_0 : i32, i32
  }
  func.func @transform_3(%arg0: i32) -> (i32, i32) {
    %c0_i32 = arith.constant 0 : i32
    %c0_i32_0 = arith.constant 0 : i32
    %c0_i32_1 = arith.constant 0 : i32
    return %c0_i32, %c0_i32_0 : i32, i32
  }
  func.func @transform_4(%arg0: i32) -> (i32, i32) {
    %c0_i32 = arith.constant 0 : i32
    %c0_i32_0 = arith.constant 0 : i32
    %c0_i32_1 = arith.constant 0 : i32
    return %c0_i32, %c0_i32_0 : i32, i32
  }
  func.func @transform_5(%arg0: i32) -> (i32, i32) {
    %c0_i32 = arith.constant 0 : i32
    %c0_i32_0 = arith.constant 0 : i32
    %c0_i32_1 = arith.constant 0 : i32
    return %c0_i32, %c0_i32_0 : i32, i32
  }
  func.func @transform_6(%arg0: i32) -> (i32, i32) {
    %c0_i32 = arith.constant 0 : i32
    %c0_i32_0 = arith.constant 0 : i32
    %c0_i32_1 = arith.constant 0 : i32
    return %c0_i32, %c0_i32_0 : i32, i32
  }
  func.func @transform_7(%arg0: i32) -> (i32, i32) {
    %c0_i32 = arith.constant 0 : i32
    %c0_i32_0 = arith.constant 0 : i32
    return %c0_i32, %arg0 : i32, i32
  }
}

</mosaic_0001>

<llo_original>
// kernel: tpu_custom_call.1
$region0: #{tpu_custom_call.1}
  #allocation0 [shape = 'u32[]', space=smem, size = 0x4, offset = 0x4, fixed_abs, tag = 'smem constant byte address 0x4 - core index']
  #allocation1 [shape = 'u32[144,128]{1,0:T(1,128)}', space=vmem, size = 0x12000, scoped, tag = 'internal scratch']
  #allocation2 [shape = 'f32[1,1]{1,0:T(1,128)S(6)}', space=smem, size = 0x200, scoped, tag = 'scoped memory for tpu_custom_call.1']
  %s0 = inlined_call_operand.vmem [shape: f32[1,1024], index: 0, kind: input, shape index: {}]
  %s1 = inlined_call_operand.vmem [shape: f32[32,1], index: 1, kind: input, shape index: {}]
  %s2 = inlined_call_operand.vmem [shape: f32[32,1], index: 2, kind: input, shape index: {}]
  %s3 = inlined_call_operand.vmem [shape: f32[32,32], index: 3, kind: input, shape index: {}]
  %s4 = inlined_call_operand.vmem [shape: f32[32,1], index: 4, kind: input, shape index: {}]
  %s5 = inlined_call_operand.vmem [shape: f32[32,1], index: 5, kind: input, shape index: {}]
  %s6 = inlined_call_operand.<no memory space> [shape: f32[1,1], index: 6, kind: input, shape index: {}]
  %s7 = inlined_call_operand.hbm [shape: f32[1,1024], index: 7, kind: output, shape index: {}]
  %s8 = sld [smem:[#allocation0]]
  $region61: #{tpu_custom_call.1} parent=0
    _
  %s10 = ssub.s32 1, %s8
  %s11 = scalar_select 0, %s10, %s8
  %12 = sst [smem:[#allocation2]] %s6
  $region1: #{tpu_custom_call.1} parent=0
    #allocation3 [shape = 'u8[4096]{0}', space=vmem, size = 0x1000, scoped, tag = 'output window, operand 0']
    #allocation4 [shape = 's32[2]{0}', space=sflag, size = 0x8, scoped, tag = 'scoped memory for tpu_custom_call.1']
    %13 = vsyncpa [#allocation4], 0
    %s14 = scalar_lea.sflag [#allocation4], 1
    %15 = vsyncpa %s14, 0
    loop: start=0, step=1, limit=4
    $region2: #{tpu_custom_call.1} parent=1 // loop_pre_header
      _
    $region3: #{tpu_custom_call.1} parent=1 // loop_header
      %s17 = sphi 0, %s21
      %p18 = scmp.ge.s32.totalorder %s17, 4
      %s27 = sphi 0, %s29
      %s30 = sphi 0, %s27
      %s31 = sphi 0, %s30
      %s47 = sphi 0, %s31
      %s51 = sphi 0, %s51
      %s53 = sphi 0, %s51
      %s54 = sphi 0, %s53
      %s68 = sphi 0, %s54
      %s72 = sphi 0, %s72
      %s74 = sphi 0, %s72
      %s75 = sphi 0, %s74
      %s89 = sphi 0, %s75
      %s93 = sphi 0, %s93
      %s95 = sphi 0, %s93
      %s96 = sphi 0, %s95
      %s110 = sphi 0, %s96
      %s114 = sphi 0, %s114
      %s116 = sphi 0, %s114
      %s117 = sphi 0, %s116
      %s131 = sphi 0, %s117
      %s135 = sphi 0, %s135
      %s137 = sphi 0, %s135
      %s138 = sphi 0, %s137
      %s152 = sphi 0, %s138
      %s156 = sphi 0, %s156
      %s158 = sphi 0, %s156
      %s159 = sphi 0, %s158
      %s173 = sphi 0, %s159
      %s179 = sphi 0, %s181
      %s182 = sphi 0, %s179
      %s183 = sphi 0, %s182
      %s199 = sphi 0, %s183
    $region4: #{tpu_custom_call.1} parent=1 // loop_header_branch
      %20 = sbr.rel (%p18) target = $region8
    $region5: #{tpu_custom_call.1} parent=1 // loop_body
      %s22 = ssub.s32 %s17, 1
      %s23 = ssub.s32 %s17, 2
      %s24 = sadd.s32 %s17, 1
      %s25 = ssub.s32 %s17, %s24
      %p26 = scmp.eq.s32.totalorder %s25, 0
      %s28 = sadd.s32 %s27, 1
      %s29 = scalar_select %p26, %s27, %s28
      %p32 = pneg %p26
      %p33 = scmp.eq.s32.totalorder %s17, 1
      %p34 = por %p32, %p33
      %p35 = scmp.ne.s32.totalorder %s27, %s30
      %p36 = scmp.eq.s32.totalorder %s17, 0
      %p37 = por %p35, %p36
      %p38 = scmp.ne.s32.totalorder %s27, %s30
      %p39 = scmp.eq.s32.totalorder %s22, 1
      %p40 = por %p38, %p39
      %p41 = scmp.ne.s32.totalorder %s30, %s31
      %p42 = scmp.eq.s32.totalorder %s22, 0
      %p43 = por %p41, %p42
      %p44 = scmp.ne.s32.totalorder %s30, %s31
      %p45 = scmp.eq.s32.totalorder %s23, 1
      %p46 = por %p44, %p45
      %p48 = scmp.ne.s32.totalorder %s31, %s47
      %p49 = scmp.eq.s32.totalorder %s23, 0
      %p50 = por %p48, %p49
      %s52 = sadd.s32 %s51, 1
      %p55 = scmp.eq.s32.totalorder %s17, 1
      %p56 = scmp.ne.s32.totalorder %s51, %s53
      %p57 = scmp.eq.s32.totalorder %s17, 0
      %p58 = por %p56, %p57
      %p59 = scmp.ne.s32.totalorder %s51, %s53
      %p60 = scmp.eq.s32.totalorder %s22, 1
      %p61 = por %p59, %p60
      %p62 = scmp.ne.s32.totalorder %s53, %s54
      %p63 = scmp.eq.s32.totalorder %s22, 0
      %p64 = por %p62, %p63
      %p65 = scmp.ne.s32.totalorder %s53, %s54
      %p66 = scmp.eq.s32.totalorder %s23, 1
      %p67 = por %p65, %p66
      %p69 = scmp.ne.s32.totalorder %s54, %s68
      %p70 = scmp.eq.s32.totalorder %s23, 0
      %p71 = por %p69, %p70
      %s73 = sadd.s32 %s72, 1
      %p76 = scmp.eq.s32.totalorder %s17, 1
      %p77 = scmp.ne.s32.totalorder %s72, %s74
      %p78 = scmp.eq.s32.totalorder %s17, 0
      %p79 = por %p77, %p78
      %p80 = scmp.ne.s32.totalorder %s72, %s74
      %p81 = scmp.eq.s32.totalorder %s22, 1
      %p82 = por %p80, %p81
      %p83 = scmp.ne.s32.totalorder %s74, %s75
      %p84 = scmp.eq.s32.totalorder %s22, 0
      %p85 = por %p83, %p84
      %p86 = scmp.ne.s32.totalorder %s74, %s75
      %p87 = scmp.eq.s32.totalorder %s23, 1
      %p88 = por %p86, %p87
      %p90 = scmp.ne.s32.totalorder %s75, %s89
      %p91 = scmp.eq.s32.totalorder %s23, 0
      %p92 = por %p90, %p91
      %s94 = sadd.s32 %s93, 1
      %p97 = scmp.eq.s32.totalorder %s17, 1
      %p98 = scmp.ne.s32.totalorder %s93, %s95
      %p99 = scmp.eq.s32.totalorder %s17, 0
      %p100 = por %p98, %p99
      %p101 = scmp.ne.s32.totalorder %s93, %s95
      %p102 = scmp.eq.s32.totalorder %s22, 1
      %p103 = por %p101, %p102
      %p104 = scmp.ne.s32.totalorder %s95, %s96
      %p105 = scmp.eq.s32.totalorder %s22, 0
      %p106 = por %p104, %p105
      %p107 = scmp.ne.s32.totalorder %s95, %s96
      %p108 = scmp.eq.s32.totalorder %s23, 1
      %p109 = por %p107, %p108
      %p111 = scmp.ne.s32.totalorder %s96, %s110
      %p112 = scmp.eq.s32.totalorder %s23, 0
      %p113 = por %p111, %p112
      %s115 = sadd.s32 %s114, 1
      %p118 = scmp.eq.s32.totalorder %s17, 1
      %p119 = scmp.ne.s32.totalorder %s114, %s116
      %p120 = scmp.eq.s32.totalorder %s17, 0
      %p121 = por %p119, %p120
      %p122 = scmp.ne.s32.totalorder %s114, %s116
      %p123 = scmp.eq.s32.totalorder %s22, 1
      %p124 = por %p122, %p123
      %p125 = scmp.ne.s32.totalorder %s116, %s117
      %p126 = scmp.eq.s32.totalorder %s22, 0
      %p127 = por %p125, %p126
      %p128 = scmp.ne.s32.totalorder %s116, %s117
      %p129 = scmp.eq.s32.totalorder %s23, 1
      %p130 = por %p128, %p129
      %p132 = scmp.ne.s32.totalorder %s117, %s131
      %p133 = scmp.eq.s32.totalorder %s23, 0
      %p134 = por %p132, %p133
      %s136 = sadd.s32 %s135, 1
      %p139 = scmp.eq.s32.totalorder %s17, 1
      %p140 = scmp.ne.s32.totalorder %s135, %s137
      %p141 = scmp.eq.s32.totalorder %s17, 0
      %p142 = por %p140, %p141
      %p143 = scmp.ne.s32.totalorder %s135, %s137
      %p144 = scmp.eq.s32.totalorder %s22, 1
      %p145 = por %p143, %p144
      %p146 = scmp.ne.s32.totalorder %s137, %s138
      %p147 = scmp.eq.s32.totalorder %s22, 0
      %p148 = por %p146, %p147
      %p149 = scmp.ne.s32.totalorder %s137, %s138
      %p150 = scmp.eq.s32.totalorder %s23, 1
      %p151 = por %p149, %p150
      %p153 = scmp.ne.s32.totalorder %s138, %s152
      %p154 = scmp.eq.s32.totalorder %s23, 0
      %p155 = por %p153, %p154
      %s157 = sadd.s32 %s156, 1
      %p160 = scmp.eq.s32.totalorder %s17, 1
      %p161 = scmp.ne.s32.totalorder %s156, %s158
      %p162 = scmp.eq.s32.totalorder %s17, 0
      %p163 = por %p161, %p162
      %p164 = scmp.ne.s32.totalorder %s156, %s158
      %p165 = scmp.eq.s32.totalorder %s22, 1
      %p166 = por %p164, %p165
      %p167 = scmp.ne.s32.totalorder %s158, %s159
      %p168 = scmp.eq.s32.totalorder %s22, 0
      %p169 = por %p167, %p168
      %p170 = scmp.ne.s32.totalorder %s158, %s159
      %p171 = scmp.eq.s32.totalorder %s23, 1
      %p172 = por %p170, %p171
      %p174 = scmp.ne.s32.totalorder %s159, %s173
      %p175 = scmp.eq.s32.totalorder %s23, 0
      %p176 = por %p174, %p175
      %s177 = ssub.s32 %s17, %s24
      %p178 = scmp.eq.s32.totalorder %s177, 0
      %s180 = sadd.s32 %s179, 1
      %s181 = scalar_select %p178, %s179, %s180
      %p184 = pneg %p178
      %p185 = scmp.eq.s32.totalorder %s17, 1
      %p186 = por %p184, %p185
      %p187 = scmp.ne.s32.totalorder %s179, %s182
      %p188 = scmp.eq.s32.totalorder %s17, 0
      %p189 = por %p187, %p188
      %p190 = scmp.ne.s32.totalorder %s179, %s182
      %p191 = scmp.eq.s32.totalorder %s22, 1
      %p192 = por %p190, %p191
      %p193 = scmp.ne.s32.totalorder %s182, %s183
      %p194 = scmp.eq.s32.totalorder %s22, 0
      %p195 = por %p193, %p194
      %p196 = scmp.ne.s32.totalorder %s182, %s183
      %p197 = scmp.eq.s32.totalorder %s23, 1
      %p198 = por %p196, %p197
      %p200 = scmp.ne.s32.totalorder %s183, %s199
      %p201 = scmp.eq.s32.totalorder %s23, 0
      %p202 = por %p200, %p201
      %p203 = scmp.le.s32.totalorder 1, %s17
      %p204 = scmp.lt.s32.totalorder %s17, 3
      %p205 = pnand %p203, %p204
      %p206 = pneg %p205
      // Predicated region
      $region9: #{tpu_custom_call.1} parent=5 // pred_check
        _
      $region10: #{tpu_custom_call.1} parent=5 // pred_check_branch
        %208 = sbr.rel (%p205) target = $region12
      $region11: #{tpu_custom_call.1} parent=5 // pred_region
        %s209 = ssub.s32 %s17, 1
        // Predicated region
        $region13: #{tpu_custom_call.1} parent=11 // pred_check
          %p210 = pneg %p64
        $region14: #{tpu_custom_call.1} parent=11 // pred_check_branch
          %212 = sbr.rel (%p210) target = $region16
        $region15: #{tpu_custom_call.1} parent=11 // pred_region
          _
        $region16: #{tpu_custom_call.1} parent=11 // pred_fallthru
          _
        // Predicated region
        $region17: #{tpu_custom_call.1} parent=11 // pred_check
          %p213 = pneg %p85
        $region18: #{tpu_custom_call.1} parent=11 // pred_check_branch
          %215 = sbr.rel (%p213) target = $region20
        $region19: #{tpu_custom_call.1} parent=11 // pred_region
          _
        $region20: #{tpu_custom_call.1} parent=11 // pred_fallthru
          _
        // Predicated region
        $region21: #{tpu_custom_call.1} parent=11 // pred_check
          %p216 = pneg %p106
        $region22: #{tpu_custom_call.1} parent=11 // pred_check_branch
          %218 = sbr.rel (%p216) target = $region24
        $region23: #{tpu_custom_call.1} parent=11 // pred_region
          _
        $region24: #{tpu_custom_call.1} parent=11 // pred_fallthru
          _
        // Predicated region
        $region25: #{tpu_custom_call.1} parent=11 // pred_check
          %p219 = pneg %p127
        $region26: #{tpu_custom_call.1} parent=11 // pred_check_branch
          %221 = sbr.rel (%p219) target = $region28
        $region27: #{tpu_custom_call.1} parent=11 // pred_region
          _
        $region28: #{tpu_custom_call.1} parent=11 // pred_fallthru
          _
        // Predicated region
        $region29: #{tpu_custom_call.1} parent=11 // pred_check
          %p222 = pneg %p148
        $region30: #{tpu_custom_call.1} parent=11 // pred_check_branch
          %224 = sbr.rel (%p222) target = $region32
        $region31: #{tpu_custom_call.1} parent=11 // pred_region
          _
        $region32: #{tpu_custom_call.1} parent=11 // pred_fallthru
          _
        // Predicated region
        $region33: #{tpu_custom_call.1} parent=11 // pred_check
          %p225 = pneg %p169
        $region34: #{tpu_custom_call.1} parent=11 // pred_check_branch
          %227 = sbr.rel (%p225) target = $region36
        $region35: #{tpu_custom_call.1} parent=11 // pred_region
          _
        $region36: #{tpu_custom_call.1} parent=11 // pred_fallthru
          _
      $region12: #{tpu_custom_call.1} parent=5 // pred_fallthru
        _
      %p228 = scmp.lt.s32.totalorder %s17, 2
      // Predicated region
      $region37: #{tpu_custom_call.1} parent=5 // pred_check
        %p229 = pneg %p228
      $region38: #{tpu_custom_call.1} parent=5 // pred_check_branch
        %231 = sbr.rel (%p229) target = $region40
      $region39: #{tpu_custom_call.1} parent=5 // pred_region
        // Predicated region
        $region41: #{tpu_custom_call.1} parent=39 // pred_check
          %p232 = pneg %p37
        $region42: #{tpu_custom_call.1} parent=39 // pred_check_branch
          %234 = sbr.rel (%p232) target = $region44
        $region43: #{tpu_custom_call.1} parent=39 // pred_region
          %s235 = smul.u32 4, %s17
          %p236 = scmp.lt.s32.totalorder %s235, 7
          %s237 = scalar_select %p236, %s235, 7
          %s238 = scalar_lea.vmem %s0, %s237
          %s239 = smul.u32 4, %s17
        $region44: #{tpu_custom_call.1} parent=39 // pred_fallthru
          _
      $region40: #{tpu_custom_call.1} parent=5 // pred_fallthru
        _
      %p240 = scmp.le.s32.totalorder 1, %s17
      %p241 = scmp.lt.s32.totalorder %s17, 3
      %p242 = pnand %p240, %p241
      %p243 = pneg %p242
      // Predicated region
      $region45: #{tpu_custom_call.1} parent=5 // pred_check
        _
      $region46: #{tpu_custom_call.1} parent=5 // pred_check_branch
        %245 = sbr.rel (%p242) target = $region48
      $region47: #{tpu_custom_call.1} parent=5 // pred_region
        %s246 = ssub.s32 %s17, 1
        %s247 = smul.u32 4, %s22
        %p248 = scmp.lt.s32.totalorder %s247, 7
        %s249 = scalar_select %p248, %s247, 7
        %s250 = scalar_lea.vmem %s0, %s249
        %p251 = pneg %p43
        %p252 = pneg %p40
        %p253 = pneg %p64
        %p254 = pneg %p61
        %p255 = pneg %p85
        %p256 = pneg %p82
        %p257 = pneg %p106
        %p258 = pneg %p103
        %p259 = pneg %p127
        %p260 = pneg %p124
        %p261 = pneg %p148
        %p262 = pneg %p145
        %p263 = pneg %p169
        %p264 = pneg %p166
        %p265 = pneg %p195
        %p266 = pneg %p192
        %s267 = sand.u32 %s182, 1
        %s268 = scalar_lea.sflag [#allocation4], %s267
        %s269 = sand.u32 %s182, 1
        %s270 = smul.addr %s269, 4
        %s271 = scalar_lea.vmem [#allocation3], %s270
        %s272 = smul.u32 4, %s22
        %p273 = scmp.lt.s32.totalorder %s272, 7
        %s274 = scalar_select %p273, %s272, 7
        %s275 = scalar_lea.vmem %s0, %s274
        %s276 = smul.u32 4, %s22
        %s277 = smul.u32 4, %s22
        %v278 = vld [vmem:[%s275] sm:$0xf]
        %v279 = vld [vmem:[%s1] sm:$0xff]
        %v280 = vld [vmem:[%s1 + $0x8] sm:$0xff]
        %v281 = vld [vmem:[%s1 + $0x10] sm:$0xff]
        %v282 = vld [vmem:[%s1 + $0x18] sm:$0xff]
        %284 = vset.pattern.permute.xlu0 0
        %285 = vperm.xlu0 %284, %v279
        %v286 = vpop.permute.xlu0 %285
        %289 = vset.pattern.permute.xlu0 0
        %290 = vperm.xlu0 %289, %v280
        %v291 = vpop.permute.xlu0 %290
        %294 = vset.pattern.permute.xlu0 0
        %295 = vperm.xlu0 %294, %v281
        %v296 = vpop.permute.xlu0 %295
        %299 = vset.pattern.permute.xlu0 0
        %300 = vperm.xlu0 %299, %v282
        %v301 = vpop.permute.xlu0 %300
        %v304 = vlaneseq
        %v305 = vshrl.u32 %v304, 7
        %v306 = vsub.s32 0, %v305
        %v307 = vrot.slane %v278, %v306
        %v308 = vlaneseq
        %v309 = vshrl.u32 %v308, 7
        %v310 = vsub.s32 1, %v309
        %v311 = vrot.slane %v278, %v310
        %v312 = vlaneseq
        %v313 = vshrl.u32 %v312, 7
        %v314 = vsub.s32 2, %v313
        %v315 = vrot.slane %v278, %v314
        %v316 = vlaneseq
        %v317 = vshrl.u32 %v316, 7
        %v318 = vsub.s32 3, %v317
        %v319 = vrot.slane %v278, %v318
        %v324 = vmul.f32 %v286, %v307
        %v325 = vmul.f32 %v286, %v311
        %v326 = vmul.f32 %v286, %v315
        %v327 = vmul.f32 %v286, %v319
        %v328 = vmul.f32 %v291, %v307
        %v329 = vmul.f32 %v291, %v311
        %v330 = vmul.f32 %v291, %v315
        %v331 = vmul.f32 %v291, %v319
        %v332 = vmul.f32 %v296, %v307
        %v333 = vmul.f32 %v296, %v311
        %v334 = vmul.f32 %v296, %v315
        %v335 = vmul.f32 %v296, %v319
        %v336 = vmul.f32 %v301, %v307
        %v337 = vmul.f32 %v301, %v311
        %v338 = vmul.f32 %v301, %v315
        %v339 = vmul.f32 %v301, %v319
        %v340 = vld [vmem:[%s2] sm:$0xff]
        %v341 = vld [vmem:[%s2 + $0x8] sm:$0xff]
        %v342 = vld [vmem:[%s2 + $0x10] sm:$0xff]
        %v343 = vld [vmem:[%s2 + $0x18] sm:$0xff]
        %345 = vset.pattern.permute.xlu0 0
        %346 = vperm.xlu0 %345, %v340
        %v347 = vpop.permute.xlu0 %346
        %350 = vset.pattern.permute.xlu0 0
        %351 = vperm.xlu0 %350, %v341
        %v352 = vpop.permute.xlu0 %351
        %355 = vset.pattern.permute.xlu0 0
        %356 = vperm.xlu0 %355, %v342
        %v357 = vpop.permute.xlu0 %356
        %360 = vset.pattern.permute.xlu0 0
        %361 = vperm.xlu0 %360, %v343
        %v362 = vpop.permute.xlu0 %361
        %v364 = vadd.f32 %v324, %v347
        %v365 = vadd.f32 %v325, %v347
        %v366 = vadd.f32 %v326, %v347
        %v367 = vadd.f32 %v327, %v347
        %v368 = vadd.f32 %v328, %v352
        %v369 = vadd.f32 %v329, %v352
        %v370 = vadd.f32 %v330, %v352
        %v371 = vadd.f32 %v331, %v352
        %v372 = vadd.f32 %v332, %v357
        %v373 = vadd.f32 %v333, %v357
        %v374 = vadd.f32 %v334, %v357
        %v375 = vadd.f32 %v335, %v357
        %v376 = vadd.f32 %v336, %v362
        %v377 = vadd.f32 %v337, %v362
        %v378 = vadd.f32 %v338, %v362
        %v379 = vadd.f32 %v339, %v362
        %v380 = vmax.f32 %v364, 0.0
        %v381 = vmax.f32 %v365, 0.0
        %v382 = vmax.f32 %v366, 0.0
        %v383 = vmax.f32 %v367, 0.0
        %v384 = vmax.f32 %v368, 0.0
        %v385 = vmax.f32 %v369, 0.0
        %v386 = vmax.f32 %v370, 0.0
        %v387 = vmax.f32 %v371, 0.0
        %v388 = vmax.f32 %v372, 0.0
        %v389 = vmax.f32 %v373, 0.0
        %v390 = vmax.f32 %v374, 0.0
        %v391 = vmax.f32 %v375, 0.0
        %v392 = vmax.f32 %v376, 0.0
        %v393 = vmax.f32 %v377, 0.0
        %v394 = vmax.f32 %v378, 0.0
        %v395 = vmax.f32 %v379, 0.0
        %v396 = vld [vmem:[%s3] sm:$0xff]
        %v397 = vld [vmem:[%s3 + $0x8] sm:$0xff]
        %v398 = vld [vmem:[%s3 + $0x10] sm:$0xff]
        %v399 = vld [vmem:[%s3 + $0x18] sm:$0xff]
        %v400 = vld [vmem:[%s4] sm:$0xff]
        %v401 = vld [vmem:[%s4 + $0x8] sm:$0xff]
        %v402 = vld [vmem:[%s4 + $0x10] sm:$0xff]
        %v403 = vld [vmem:[%s4 + $0x18] sm:$0xff]
        %405 = vset.pattern.permute.xlu0 0
        %406 = vperm.xlu0 %405, %v400
        %v407 = vpop.permute.xlu0 %406
        %410 = vset.pattern.permute.xlu0 0
        %411 = vperm.xlu0 %410, %v401
        %v412 = vpop.permute.xlu0 %411
        %415 = vset.pattern.permute.xlu0 0
        %416 = vperm.xlu0 %415, %v402
        %v417 = vpop.permute.xlu0 %416
        %420 = vset.pattern.permute.xlu0 0
        %421 = vperm.xlu0 %420, %v403
        %v422 = vpop.permute.xlu0 %421
        %vm424 = vcmask 261120
        %v426 = vsel %vm424, %v396, 0
        %v429 = vsel %vm424, %v397, 0
        %v432 = vsel %vm424, %v398, 0
        %v435 = vsel %vm424, %v399, 0
        %437 = vmatprep.subr.mxu0 %v381
        %438 = vmatpush1.msra.mxu0 %v380
        %439 = vmatprep.subr.mxu0 %v385
        %440 = vmatpush1.msra.mxu0 %v384
        %441 = vmatprep.subr.mxu0 %v389
        %442 = vmatpush1.msra.mxu0 %v388
        %443 = vmatprep.subr.mxu0 %v393
        %444 = vmatpush1.msra.mxu0 %v392
        %445 = vmatprep.subr.mxu0 0.0
        %446 = vmatpush1.msra.mxu0 0.0
        %447 = vmatprep.subr.mxu0 0.0
        %448 = vmatpush1.msra.mxu0 0.0
        %449 = vmatprep.subr.mxu0 0.0
        %450 = vmatpush1.msra.mxu0 0.0
        %451 = vmatprep.subr.mxu0 0.0
        %452 = vmatpush1.msra.mxu0 0.0
        %453 = vmatprep.subr.mxu0 0.0
        %454 = vmatpush1.msra.mxu0 0.0
        %455 = vmatprep.subr.mxu0 0.0
        %456 = vmatpush1.msra.mxu0 0.0
        %457 = vmatprep.subr.mxu0 0.0
        %458 = vmatpush1.msra.mxu0 0.0
        %459 = vmatprep.subr.mxu0 0.0
        %460 = vmatpush1.msra.mxu0 0.0
        %461 = vmatprep.subr.mxu0 0.0
        %462 = vmatpush1.msra.mxu0 0.0
        %463 = vmatprep.subr.mxu0 0.0
        %464 = vmatpush1.msra.mxu0 0.0
        %465 = vmatprep.subr.mxu0 0.0
        %466 = vmatpush1.msra.mxu0 0.0
        %467 = vmatprep.subr.mxu0 0.0
        %468 = vmatpush1.msra.mxu0 0.0
        %469 = vmatprep.subr.mxu0 0.0
        %470 = vmatpush1.msra.mxu0 0.0
        %471 = vmatprep.subr.mxu0 0.0
        %472 = vmatpush1.msra.mxu0 0.0
        %473 = vmatprep.subr.mxu0 0.0
        %474 = vmatpush1.msra.mxu0 0.0
        %475 = vmatprep.subr.mxu0 0.0
        %476 = vmatpush1.msra.mxu0 0.0
        %477 = vmatprep.subr.mxu0 0.0
        %478 = vmatpush1.msra.mxu0 0.0
        %479 = vmatprep.subr.mxu0 0.0
        %480 = vmatpush1.msra.mxu0 0.0
        %481 = vmatprep.subr.mxu0 0.0
        %482 = vmatpush1.msra.mxu0 0.0
        %483 = vmatprep.subr.mxu0 0.0
        %484 = vmatpush1.msra.mxu0 0.0
        %485 = vmatprep.subr.mxu0 0.0
        %486 = vmatpush1.msra.mxu0 0.0
        %487 = vmatprep.subr.mxu0 0.0
        %488 = vmatpush1.msra.mxu0 0.0
        %489 = vmatprep.subr.mxu0 0.0
        %490 = vmatpush1.msra.mxu0 0.0
        %491 = vmatprep.subr.mxu0 0.0
        %492 = vmatpush1.msra.mxu0 0.0
        %493 = vmatprep.subr.mxu0 0.0
        %494 = vmatpush1.msra.mxu0 0.0
        %495 = vmatprep.subr.mxu0 0.0
        %496 = vmatpush1.msra.mxu0 0.0
        %497 = vmatprep.subr.mxu0 0.0
        %498 = vmatpush1.msra.mxu0 0.0
        %499 = vmatprep.subr.mxu0 0.0
        %500 = vmatpush1.msra.mxu0 0.0
        %501 = vmatprep.mubr.f32.mxu0 0.0
        %502 = vmatmul.mubr.f32.gmra.mrb[0].mxu0 %v426
        %v503 = vpop.f32.mrb[0].mxu0
        %v504 = vadd.f32 %v407, %v503
        %v505 = vpop.f32.mrb[0].mxu0
        %v506 = vadd.f32 %v407, %v505
        %507 = vmatprep.mubr.f32.mxu0 0.0
        %508 = vmatmul.mubr.f32.gmra.mrb[0].mxu0 %v429
        %v509 = vpop.f32.mrb[0].mxu0
        %v510 = vadd.f32 %v412, %v509
        %v511 = vpop.f32.mrb[0].mxu0
        %v512 = vadd.f32 %v412, %v511
        %513 = vmatprep.mubr.f32.mxu0 0.0
        %514 = vmatmul.mubr.f32.gmra.mrb[0].mxu0 %v432
        %v515 = vpop.f32.mrb[0].mxu0
        %v516 = vadd.f32 %v417, %v515
        %v517 = vpop.f32.mrb[0].mxu0
        %v518 = vadd.f32 %v417, %v517
        %519 = vmatprep.mubr.f32.mxu0 0.0
        %520 = vmatmul.mubr.f32.gmra.mrb[0].mxu0 %v435
        %v521 = vpop.f32.mrb[0].mxu0
        %v522 = vadd.f32 %v422, %v521
        %v523 = vpop.f32.mrb[0].mxu0
        %v524 = vadd.f32 %v422, %v523
        %525 = vdwg.mxu0
        %526 = vmatprep.subr.mxu0 %v383
        %527 = vmatpush1.msra.mxu0 %v382
        %528 = vmatprep.subr.mxu0 %v387
        %529 = vmatpush1.msra.mxu0 %v386
        %530 = vmatprep.subr.mxu0 %v391
        %531 = vmatpush1.msra.mxu0 %v390
        %532 = vmatprep.subr.mxu0 %v395
        %533 = vmatpush1.msra.mxu0 %v394
        %534 = vmatprep.subr.mxu0 0.0
        %535 = vmatpush1.msra.mxu0 0.0
        %536 = vmatprep.subr.mxu0 0.0
        %537 = vmatpush1.msra.mxu0 0.0
        %538 = vmatprep.subr.mxu0 0.0
        %539 = vmatpush1.msra.mxu0 0.0
        %540 = vmatprep.subr.mxu0 0.0
        %541 = vmatpush1.msra.mxu0 0.0
        %542 = vmatprep.subr.mxu0 0.0
        %543 = vmatpush1.msra.mxu0 0.0
        %544 = vmatprep.subr.mxu0 0.0
        %545 = vmatpush1.msra.mxu0 0.0
        %546 = vmatprep.subr.mxu0 0.0
        %547 = vmatpush1.msra.mxu0 0.0
        %548 = vmatprep.subr.mxu0 0.0
        %549 = vmatpush1.msra.mxu0 0.0
        %550 = vmatprep.subr.mxu0 0.0
        %551 = vmatpush1.msra.mxu0 0.0
        %552 = vmatprep.subr.mxu0 0.0
        %553 = vmatpush1.msra.mxu0 0.0
        %554 = vmatprep.subr.mxu0 0.0
        %555 = vmatpush1.msra.mxu0 0.0
        %556 = vmatprep.subr.mxu0 0.0
        %557 = vmatpush1.msra.mxu0 0.0
        %558 = vmatprep.subr.mxu0 0.0
        %559 = vmatpush1.msra.mxu0 0.0
        %560 = vmatprep.subr.mxu0 0.0
        %561 = vmatpush1.msra.mxu0 0.0
        %562 = vmatprep.subr.mxu0 0.0
        %563 = vmatpush1.msra.mxu0 0.0
        %564 = vmatprep.subr.mxu0 0.0
        %565 = vmatpush1.msra.mxu0 0.0
        %566 = vmatprep.subr.mxu0 0.0
        %567 = vmatpush1.msra.mxu0 0.0
        %568 = vmatprep.subr.mxu0 0.0
        %569 = vmatpush1.msra.mxu0 0.0
        %570 = vmatprep.subr.mxu0 0.0
        %571 = vmatpush1.msra.mxu0 0.0
        %572 = vmatprep.subr.mxu0 0.0
        %573 = vmatpush1.msra.mxu0 0.0
        %574 = vmatprep.subr.mxu0 0.0
        %575 = vmatpush1.msra.mxu0 0.0
        %576 = vmatprep.subr.mxu0 0.0
        %577 = vmatpush1.msra.mxu0 0.0
        %578 = vmatprep.subr.mxu0 0.0
        %579 = vmatpush1.msra.mxu0 0.0
        %580 = vmatprep.subr.mxu0 0.0
        %581 = vmatpush1.msra.mxu0 0.0
        %582 = vmatprep.subr.mxu0 0.0
        %583 = vmatpush1.msra.mxu0 0.0
        %584 = vmatprep.subr.mxu0 0.0
        %585 = vmatpush1.msra.mxu0 0.0
        %586 = vmatprep.subr.mxu0 0.0
        %587 = vmatpush1.msra.mxu0 0.0
        %588 = vmatprep.subr.mxu0 0.0
        %589 = vmatpush1.msra.mxu0 0.0
        %590 = vmatprep.mubr.f32.mxu0 0.0
        %591 = vmatmul.mubr.f32.gmra.mrb[0].mxu0 %v426
        %v592 = vpop.f32.mrb[0].mxu0
        %v593 = vadd.f32 %v407, %v592
        %v594 = vpop.f32.mrb[0].mxu0
        %v595 = vadd.f32 %v407, %v594
        %596 = vmatprep.mubr.f32.mxu0 0.0
        %597 = vmatmul.mubr.f32.gmra.mrb[0].mxu0 %v429
        %v598 = vpop.f32.mrb[0].mxu0
        %v599 = vadd.f32 %v412, %v598
        %v600 = vpop.f32.mrb[0].mxu0
        %v601 = vadd.f32 %v412, %v600
        %602 = vmatprep.mubr.f32.mxu0 0.0
        %603 = vmatmul.mubr.f32.gmra.mrb[0].mxu0 %v432
        %v604 = vpop.f32.mrb[0].mxu0
        %v605 = vadd.f32 %v417, %v604
        %v606 = vpop.f32.mrb[0].mxu0
        %v607 = vadd.f32 %v417, %v606
        %608 = vmatprep.mubr.f32.mxu0 0.0
        %609 = vmatmul.mubr.f32.gmra.mrb[0].mxu0 %v435
        %v610 = vpop.f32.mrb[0].mxu0
        %v611 = vadd.f32 %v422, %v610
        %v612 = vpop.f32.mrb[0].mxu0
        %v613 = vadd.f32 %v422, %v612
        %614 = vdwg.mxu0
        %v615 = vmax.f32 %v504, 0.0
        %v616 = vmax.f32 %v506, 0.0
        %v617 = vmax.f32 %v593, 0.0
        %v618 = vmax.f32 %v595, 0.0
        %v619 = vmax.f32 %v510, 0.0
        %v620 = vmax.f32 %v512, 0.0
        %v621 = vmax.f32 %v599, 0.0
        %v622 = vmax.f32 %v601, 0.0
        %v623 = vmax.f32 %v516, 0.0
        %v624 = vmax.f32 %v518, 0.0
        %v625 = vmax.f32 %v605, 0.0
        %v626 = vmax.f32 %v607, 0.0
        %v627 = vmax.f32 %v522, 0.0
        %v628 = vmax.f32 %v524, 0.0
        %v629 = vmax.f32 %v611, 0.0
        %v630 = vmax.f32 %v613, 0.0
        %v631 = vld [vmem:[%s5] sm:$0xff]
        %v632 = vld [vmem:[%s5 + $0x8] sm:$0xff]
        %v633 = vld [vmem:[%s5 + $0x10] sm:$0xff]
        %v634 = vld [vmem:[%s5 + $0x18] sm:$0xff]
        %636 = vset.pattern.permute.xlu0 0
        %637 = vperm.xlu0 %636, %v631
        %v638 = vpop.permute.xlu0 %637
        %641 = vset.pattern.permute.xlu0 0
        %642 = vperm.xlu0 %641, %v632
        %v643 = vpop.permute.xlu0 %642
        %646 = vset.pattern.permute.xlu0 0
        %647 = vperm.xlu0 %646, %v633
        %v648 = vpop.permute.xlu0 %647
        %651 = vset.pattern.permute.xlu0 0
        %652 = vperm.xlu0 %651, %v634
        %v653 = vpop.permute.xlu0 %652
        %v655 = vmul.f32 %v615, %v638
        %v656 = vmul.f32 %v616, %v638
        %v657 = vmul.f32 %v617, %v638
        %v658 = vmul.f32 %v618, %v638
        %v659 = vmul.f32 %v619, %v643
        %v660 = vmul.f32 %v620, %v643
        %v661 = vmul.f32 %v621, %v643
        %v662 = vmul.f32 %v622, %v643
        %v663 = vmul.f32 %v623, %v648
        %v664 = vmul.f32 %v624, %v648
        %v665 = vmul.f32 %v625, %v648
        %v666 = vmul.f32 %v626, %v648
        %v667 = vmul.f32 %v627, %v653
        %v668 = vmul.f32 %v628, %v653
        %v669 = vmul.f32 %v629, %v653
        %v670 = vmul.f32 %v630, %v653
        %v671 = vadd.f32 %v655, %v659
        %v672 = vadd.f32 %v671, %v663
        %v673 = vadd.f32 %v672, %v667
        %v674 = vrot.slane %v673, 4
        %v675 = vadd.f32 %v673, %v674
        %v676 = vrot.slane %v675, 2
        %v677 = vadd.f32 %v675, %v676
        %v678 = vrot.slane %v677, 1
        %v679 = vadd.f32 %v677, %v678
        %v680 = vadd.f32 %v656, %v660
        %v681 = vadd.f32 %v680, %v664
        %v682 = vadd.f32 %v681, %v668
        %v683 = vrot.slane %v682, 4
        %v684 = vadd.f32 %v682, %v683
        %v685 = vrot.slane %v684, 2
        %v686 = vadd.f32 %v684, %v685
        %v687 = vrot.slane %v686, 1
        %v688 = vadd.f32 %v686, %v687
        %v689 = vadd.f32 %v657, %v661
        %v690 = vadd.f32 %v689, %v665
        %v691 = vadd.f32 %v690, %v669
        %v692 = vrot.slane %v691, 4
        %v693 = vadd.f32 %v691, %v692
        %v694 = vrot.slane %v693, 2
        %v695 = vadd.f32 %v693, %v694
        %v696 = vrot.slane %v695, 1
        %v697 = vadd.f32 %v695, %v696
        %v698 = vadd.f32 %v658, %v662
        %v699 = vadd.f32 %v698, %v666
        %v700 = vadd.f32 %v699, %v670
        %v701 = vrot.slane %v700, 4
        %v702 = vadd.f32 %v700, %v701
        %v703 = vrot.slane %v702, 2
        %v704 = vadd.f32 %v702, %v703
        %v705 = vrot.slane %v704, 1
        %v706 = vadd.f32 %v704, %v705
        %s707 = sld [smem:[#allocation2]]
        %v708 = vstv %s707
        %v709 = vadd.f32 %v679, %v708
        %v710 = vadd.f32 %v688, %v708
        %v711 = vadd.f32 %v697, %v708
        %v712 = vadd.f32 %v706, %v708
        %v717 = vcombine.low %v709, %v710
        %v718 = vcombine.low %v711, %v712
        %v720 = vunpack.c.l.s4 1966171168
        %v721 = vunpack.c.0.s8 %v720
        %v722 = vlaneseq
        %v723 = vshrl.u32 %v722, 7
        %v724 = vsub.s32 %v721, %v723
        %v725 = vrot.slane %v717, %v724
        %v727 = vunpack.c.l.s4 1966171168
        %v728 = vunpack.c.0.s8 %v727
        %v729 = vlaneseq
        %v730 = vshrl.u32 %v729, 7
        %v731 = vsub.s32 %v728, %v730
        %v732 = vrot.slane %v718, %v731
        %v733 = vcombine.low %v725, %v732
        %v735 = vunpack.c.l.s4 1966171168
        %v736 = vunpack.c.0.s8 %v735
        %v737 = vlaneseq
        %v738 = vshrl.u32 %v737, 7
        %v739 = vsub.s32 %v736, %v738
        %v740 = vrot.slane %v733, %v739
        %v742 = vlaneseq
        %vm743 = vcmp.ge.s32.totalorder %v742, 0
        %vm744 = vcmp.lt.s32.totalorder %v742, 512
        %vm745 = vmand %vm743, %vm744
        %746 = vst.msk [vmem:[%s271] sm:$0xf] %vm745, %v740
        %s747 = sand.u32 %s182, 1
        %s748 = scalar_lea.sflag [#allocation4], %s747
        %s749 = sand.u32 %s182, 1
        %s750 = smul.addr %s749, 4
        %s751 = scalar_lea.vmem [#allocation3], %s750
        // Predicated region
        $region49: #{tpu_custom_call.1} parent=47 // pred_check
          %p752 = pneg %p192
        $region50: #{tpu_custom_call.1} parent=47 // pred_check_branch
          %754 = sbr.rel (%p752) target = $region52
        $region51: #{tpu_custom_call.1} parent=47 // pred_region
          %s755 = smul.u32 4, %s22
          %s757 = ssub.s32 64, 64
          %758 = vsyncadd %s748, %s757
          %s759 = smul.addr %s755, 16
          %s760 = scalar_lea.hbm %s7, %s759
          %s762 = sshll.u32 %s751, 4
          %s763 = int_to_ptr.vmem [resolvable:$true] %s762
          %765 = dma.vmem_to_hbm [thread:$0]  %s763, 64, %s760, %s748
        $region52: #{tpu_custom_call.1} parent=47 // pred_fallthru
          _
      $region48: #{tpu_custom_call.1} parent=5 // pred_fallthru
        _
      %p766 = scmp.le.s32.totalorder 2, %s17
      // Predicated region
      $region53: #{tpu_custom_call.1} parent=5 // pred_check
        %p767 = pneg %p766
      $region54: #{tpu_custom_call.1} parent=5 // pred_check_branch
        %769 = sbr.rel (%p767) target = $region56
      $region55: #{tpu_custom_call.1} parent=5 // pred_region
        %s770 = ssub.s32 %s17, 2
        // Predicated region
        $region57: #{tpu_custom_call.1} parent=55 // pred_check
          %p771 = pneg %p198
        $region58: #{tpu_custom_call.1} parent=55 // pred_check_branch
          %773 = sbr.rel (%p771) target = $region60
        $region59: #{tpu_custom_call.1} parent=55 // pred_region
          %s774 = sand.u32 %s183, 1
          %s775 = scalar_lea.sflag [#allocation4], %s774
          %s776 = sand.u32 %s183, 1
          %s777 = smul.addr %s776, 4
          %s778 = scalar_lea.vmem [#allocation3], %s777
          %779 = dma.done %s775, 64
        $region60: #{tpu_custom_call.1} parent=55 // pred_fallthru
          _
      $region56: #{tpu_custom_call.1} parent=5 // pred_fallthru
        _
    $region6: #{tpu_custom_call.1} parent=1 // loop_footer
      %s21 = sadd.s32 1, %s17
    $region7: #{tpu_custom_call.1} parent=1 // loop_footer_branch
      %16 = sbr.rel target = $region3
    $region8: #{tpu_custom_call.1} parent=1 // loop_exit
      _
    %780 = vsyncpa [#allocation4], 1
    %s781 = scalar_lea.sflag [#allocation4], 1
    %782 = vsyncpa %s781, 1

</llo_original>
